<compile_context>
chip_gen: v7x
topology: tpu7x:2x2x1
jax: 0.10.0
libtpu: 0.0.40
codegen_flags: <defaults>
</compile_context>

<pallas_src>
import jax
import jax.numpy as jnp
from jax import lax
from jax.experimental import pallas as pl
from jax.experimental.pallas import tpu as pltpu
import numpy as np


def _round_up(v, m):
    return ((v + m - 1) // m) * m


# -----------------------------------------------------------------------------
# Fused kernel (one row-tile of the (n, n_pad) output per grid step)
# -----------------------------------------------------------------------------
def _ode_kernel(gx_ref, feat_ref, caug_ref, zs_ref, alpha_ref, cols_ref, out_ref):
    # gx_ref   : (tr, 8)     raw GP features, duplicated halves: [x0, x1, x0, x1]
    # feat_ref : (3, 8)      rows: 1/L (duplicated), hi-mask, lo-mask
    # caug_ref : (8, 2Mp)    augmented block-diag constants (the -0.5 already folded)
    # zs_ref   : (1, 2Mp)    -0.5 * ||Z/L||^2  (0 in padded lanes)
    # alpha_ref: (2Mp, 2)    block-diag inducing weights with sigma_f folded in
    # cols_ref : (3, n_pad)  rows: [1,0,-x[:,0]|0], [0,1,-x[:,1]|0], [1,1,1/x[:,2]|1]
    # out_ref  : (tr, n_pad)
    feat = feat_ref[...]
    t = gx_ref[...] * feat[0:1, :]                    # X = x * (1/L), one VPU mul
    # lanes 0-3 -> X, lanes 4-7 -> X**2 (pure VPU, no cross-lane movement)
    lhs = t * (t * feat[1:2, :] + feat[2:3, :])       # (tr, 8)

    # Full RBF exponent (-0.5 * dist) for both GPs in one tiny MXU push.
    expo = jnp.dot(lhs, caug_ref[...], preferred_element_type=jnp.float32) + zs_ref[...]
    K = jnp.exp(expo)                                 # one EUP pass (sigma in alpha)

    # (tr, 2Mp) @ (2Mp, 2) -> [y0 | y1]
    Y = jnp.dot(K, alpha_ref[...], preferred_element_type=jnp.float32)
    y0 = Y[:, 0:1]
    y1 = Y[:, 1:2]

    cols = cols_ref[...]
    # col 0 -> y0, col 1 -> y1, col 2+j -> -(x[j,0]*y0 + x[j,1]*y1)/x[j,2],
    # padded cols -> 0.  Reciprocal divisor row: multiply, no in-kernel divide.
    out_ref[...] = (cols[0:1, :] * y0 + cols[1:2, :] * y1) * cols[2:3, :]


# -----------------------------------------------------------------------------
# One-time parameter preparation (depends only on params, not on x)
# -----------------------------------------------------------------------------
def prepare_params(params):
    M = params["Z0"].shape[0]
    L0 = params["L0"].astype(jnp.float32)
    L1 = params["L1"].astype(jnp.float32)
    Z0s = params["Z0"].astype(jnp.float32) / L0                  # (M, 2)
    Z1s = params["Z1"].astype(jnp.float32) / L1                  # (M, 2)

    two_m = 2 * M
    two_m_pad = _round_up(max(two_m, 128), 128)                  # lane-dense K tile
    padm = two_m_pad - two_m

    zM = jnp.zeros((M,), jnp.float32)
    zP = jnp.zeros((padm,), jnp.float32)
    nh0 = jnp.concatenate([jnp.full((M,), -0.5, jnp.float32), zM, zP])  # GP0 lanes
    nh1 = jnp.concatenate([zM, jnp.full((M,), -0.5, jnp.float32), zP])  # GP1 lanes

    # rows 0-3: block-diag (Z/L)^T (cross term; -0.5 * -2 folds to +1 exactly)
    # rows 4-7: -0.5 masks multiplying the squared features
    caug = jnp.stack([
        jnp.concatenate([Z0s[:, 0], zM, zP]),
        jnp.concatenate([Z0s[:, 1], zM, zP]),
        jnp.concatenate([zM, Z1s[:, 0], zP]),
        jnp.concatenate([zM, Z1s[:, 1], zP]),
        nh0, nh0, nh1, nh1,
    ], axis=0)                                                   # (8, 2Mp)

    zsrow = -0.5 * jnp.concatenate([(Z0s ** 2).sum(1), (Z1s ** 2).sum(1), zP])
    zsrow = zsrow.reshape(1, two_m_pad)                          # (1, 2Mp)

    # sigma_f folded into the block-diagonal alpha; padded lanes stay 0.
    s0 = jnp.asarray(params["s0"], jnp.float32)
    s1 = jnp.asarray(params["s1"], jnp.float32)
    alpha = jnp.zeros((two_m_pad, 2), jnp.float32)
    alpha = alpha.at[:M, 0].set(s0 * params["a0"][:, 0].astype(jnp.float32))
    alpha = alpha.at[M:two_m, 1].set(s1 * params["a1"][:, 0].astype(jnp.float32))

    inv_l = 1.0 / jnp.concatenate([L0, L1])                      # reciprocal lengthscales
    inv8 = jnp.tile(inv_l, 2).reshape(1, 8)
    hi = jnp.array([[0., 0., 0., 0., 1., 1., 1., 1.]], jnp.float32)
    feat = jnp.concatenate([inv8, hi, 1.0 - hi], axis=0)         # (3, 8)
    return feat, caug, zsrow, alpha


# -----------------------------------------------------------------------------
# Row-tile sizing: biggest tile that keeps the double-buffered output block small
# -----------------------------------------------------------------------------
def _pick_tile_r(n, n_pad):
    tile_r = min(256, _round_up(n, 8))
    while tile_r > 8 and 2 * tile_r * n_pad * 4 > (8 << 20):
        tile_r = max(8, _round_up(tile_r // 2, 8))
    return tile_r


# -----------------------------------------------------------------------------
# Forward wrapper: thin glue (fused by jit) + a single pallas_call
# -----------------------------------------------------------------------------
def _ode_forward(x, feat, caug, zsrow, alpha):
    n = x.shape[0]
    two_m_pad = caug.shape[1]
    x = x.astype(jnp.float32)

    # GP inputs (keeps the torch cat((x[:,0],x[:,2])).reshape(n,2) semantics)
    x0 = x[:, 1:3]
    x1 = jnp.concatenate([x[:, 0], x[:, 2]]).reshape(n, 2)
    gx8 = jnp.concatenate([x0, x1, x0, x1], axis=1)              # (n, 8)

    # Lane-dense output: pad n+2 columns up to a multiple of 128.
    n_pad = _round_up(n + 2, 128)
    pad = n_pad - (n + 2)
    arow = jnp.concatenate([jnp.array([1.0, 0.0], jnp.float32), -x[:, 0],
                            jnp.zeros((pad,), jnp.float32)])
    brow = jnp.concatenate([jnp.array([0.0, 1.0], jnp.float32), -x[:, 1],
                            jnp.zeros((pad,), jnp.float32)])
    drow = jnp.concatenate([jnp.array([1.0, 1.0], jnp.float32), 1.0 / x[:, 2],
                            jnp.ones((pad,), jnp.float32)])      # reciprocal divisor row
    cols = jnp.stack([arow, brow, drow], axis=0)                 # (3, n_pad)

    tile_r = _pick_tile_r(n, n_pad)
    grid = (pl.cdiv(n, tile_r),)

    out_padded = pl.pallas_call(
        _ode_kernel,
        out_shape=jax.ShapeDtypeStruct((n, n_pad), jnp.float32),
        grid=grid,
        in_specs=[
            pl.BlockSpec((tile_r, 8), lambda i: (i, 0)),          # gx8 (row-tiled)
            pl.BlockSpec((3, 8), lambda i: (0, 0)),               # feat
            pl.BlockSpec((8, two_m_pad), lambda i: (0, 0)),       # caug
            pl.BlockSpec((1, two_m_pad), lambda i: (0, 0)),       # zsrow
            pl.BlockSpec((two_m_pad, 2), lambda i: (0, 0)),       # alpha
            pl.BlockSpec((3, n_pad), lambda i: (0, 0)),           # cols
        ],
        out_specs=pl.BlockSpec((tile_r, n_pad), lambda i: (i, 0)),
        # Row tiling pipelines the output write-back and (with "parallel") shards
        # row tiles across v7x's two TensorCores; explicit VMEM limit keeps the
        # block sizing valid on v7x's 64 MiB as well as v5e/v6e's 128 MiB.
        compiler_params=pltpu.CompilerParams(
            dimension_semantics=("parallel",),
            vmem_limit_bytes=32 * 1024 * 1024),
        # TODO(synk): for the ODE-integrator use case (tiny n per step), add a
        # leading batch axis over states / time sub-steps as an extra "parallel"
        # grid dim so one launch amortizes many evaluations.
    )(gx8, feat, caug, zsrow, alpha, cols)

    return out_padded[:, :n + 2]


ode_forward = jax.jit(_ode_forward)


# -----------------------------------------------------------------------------
# Pure-JAX reference (mirrors the PyTorch semantics exactly)
# -----------------------------------------------------------------------------
def _gp_ref(x2, Z, L, a, s):
    X = x2 / L
    X2 = Z / L
    Xs = (X ** 2).sum(1)
    X2s = (X2 ** 2).sum(1)
    dist = (-2.0 * jnp.dot(X, X2.T, precision=lax.Precision.HIGHEST)
            + Xs[:, None] + X2s[None, :])
    K = s * jnp.exp(-0.5 * dist)
    return jnp.dot(K, a, precision=lax.Precision.HIGHEST)


def ode_ref(x, params):
    n = x.shape[0]
    x0 = x[:, 1:3]
    x1 = jnp.concatenate([x[:, 0], x[:, 2]]).reshape(n, 2)
    y0 = _gp_ref(x0, params["Z0"], params["L0"], params["a0"], params["s0"])
    y1 = _gp_ref(x1, params["Z1"], params["L1"], params["a1"], params["s1"])
    xa = x[:, 0][None, :]
    xb = x[:, 1][None, :]
    xc = x[:, 2][None, :]
    y2 = -(xa * y0 + xb * y1) / xc                               # (n, n)
    return jnp.concatenate([y0, jnp.concatenate([y1, y2], axis=1)], axis=1)


# -----------------------------------------------------------------------------
if __name__ == "__main__":
    n, dim, M = 8, 3, 16
    key = jax.random.PRNGKey(0)
    kx, kz0, kz1, ka0, ka1, kl0, kl1 = jax.random.split(key, 7)

    # keep x[:, 2] away from zero (it is a divisor in the forward pass)
    x = jax.random.normal(kx, (n, dim), dtype=jnp.float32)
    x = x.at[:, 2].set(jnp.abs(x[:, 2]) + 1.0)

    params = {
        "Z0": jax.random.normal(kz0, (M, 2), dtype=jnp.float32),
        "Z1": jax.random.normal(kz1, (M, 2), dtype=jnp.float32),
        "a0": jax.random.normal(ka0, (M, 1), dtype=jnp.float32),
        "a1": jax.random.normal(ka1, (M, 1), dtype=jnp.float32),
        "L0": 0.5 + jax.random.uniform(kl0, (2,), dtype=jnp.float32),
        "L1": 0.5 + jax.random.uniform(kl1, (2,), dtype=jnp.float32),
        "s0": jnp.float32(1.3),
        "s1": jnp.float32(0.7),
    }

    feat, caug, zsrow, alpha = prepare_params(params)   # one-time param prep

    out = jax.block_until_ready(ode_forward(x, feat, caug, zsrow, alpha))
    ref = jax.block_until_ready(ode_ref(x, params))

    assert out.shape == (n, n + 2), out.shape
    assert out.dtype == jnp.float32
    np.testing.assert_allclose(np.asarray(out), np.asarray(ref),
                               rtol=1e-4, atol=1e-4)
    print("KERNEL_OK")
</pallas_src>

<mosaic_0001>
module attributes {stable_mosaic.version = 11 : i64} {
  func.func @_ode_kernel(%arg0: i32, %arg1: memref<8x8xf32, #tpu.memory_space<vmem>>, %arg2: memref<3x8xf32, #tpu.memory_space<vmem>>, %arg3: memref<8x128xf32, #tpu.memory_space<vmem>>, %arg4: memref<1x128xf32, #tpu.memory_space<vmem>>, %arg5: memref<128x2xf32, #tpu.memory_space<vmem>>, %arg6: memref<3x128xf32, #tpu.memory_space<vmem>>, %arg7: memref<8x128xf32, #tpu.memory_space<vmem>>) attributes {dimension_semantics = [#tpu.dimension_semantics<parallel>], iteration_bounds = array<i64: 1>, scalar_prefetch = 0 : i64, scratch_operands = 0 : i64, tpu.core_type = #tpu.core_type<tc>, window_params = [{transform_indices = @transform_0, window_bounds = array<i64: 8, 8>}, {pipeline_mode = #tpu.pipeline_mode<synchronous>, transform_indices = @transform_1, window_bounds = array<i64: 3, 8>}, {pipeline_mode = #tpu.pipeline_mode<synchronous>, transform_indices = @transform_2, window_bounds = array<i64: 8, 128>}, {pipeline_mode = #tpu.pipeline_mode<synchronous>, transform_indices = @transform_3, window_bounds = array<i64: 1, 128>}, {pipeline_mode = #tpu.pipeline_mode<synchronous>, transform_indices = @transform_4, window_bounds = array<i64: 128, 2>}, {pipeline_mode = #tpu.pipeline_mode<synchronous>, transform_indices = @transform_5, window_bounds = array<i64: 3, 128>}, {transform_indices = @transform_6, window_bounds = array<i64: 8, 128>}]} {
    %c0 = arith.constant 0 : index
    %c0_0 = arith.constant 0 : index
    %0 = vector.load %arg2[%c0, %c0_0] : memref<3x8xf32, #tpu.memory_space<vmem>>, vector<3x8xf32>
    %c0_1 = arith.constant 0 : index
    %c0_2 = arith.constant 0 : index
    %1 = vector.load %arg1[%c0_1, %c0_2] : memref<8x8xf32, #tpu.memory_space<vmem>>, vector<8x8xf32>
    %2 = vector.extract_strided_slice %0 {offsets = [0, 0], sizes = [1, 8], strides = [1, 1]} : vector<3x8xf32> to vector<1x8xf32>
    %3 = vector.broadcast %2 : vector<1x8xf32> to vector<8x8xf32>
    %4 = arith.mulf %1, %3 : vector<8x8xf32>
    %5 = vector.extract_strided_slice %0 {offsets = [1, 0], sizes = [1, 8], strides = [1, 1]} : vector<3x8xf32> to vector<1x8xf32>
    %6 = vector.broadcast %5 : vector<1x8xf32> to vector<8x8xf32>
    %7 = arith.mulf %4, %6 : vector<8x8xf32>
    %8 = vector.extract_strided_slice %0 {offsets = [2, 0], sizes = [1, 8], strides = [1, 1]} : vector<3x8xf32> to vector<1x8xf32>
    %9 = vector.broadcast %8 : vector<1x8xf32> to vector<8x8xf32>
    %10 = arith.addf %7, %9 : vector<8x8xf32>
    %11 = arith.mulf %4, %10 : vector<8x8xf32>
    %c0_3 = arith.constant 0 : index
    %c0_4 = arith.constant 0 : index
    %12 = vector.load %arg3[%c0_3, %c0_4] : memref<8x128xf32, #tpu.memory_space<vmem>>, vector<8x128xf32>
    %cst = arith.constant dense<0.000000e+00> : vector<8x128xf32>
    %13 = tpu.matmul %11, %12, %cst {dimension_numbers = #tpu.dot_dimension_numbers<[1], [0], [0], [1], [0, 0, 1, 1], [], []>} : vector<8x8xf32>, vector<8x128xf32>, vector<8x128xf32> -> vector<8x128xf32>
    %c0_5 = arith.constant 0 : index
    %c0_6 = arith.constant 0 : index
    %14 = vector.load %arg4[%c0_5, %c0_6] : memref<1x128xf32, #tpu.memory_space<vmem>>, vector<1x128xf32>
    %15 = vector.broadcast %14 : vector<1x128xf32> to vector<8x128xf32>
    %16 = arith.addf %13, %15 : vector<8x128xf32>
    %17 = math.exp %16 : vector<8x128xf32>
    %c0_7 = arith.constant 0 : index
    %c0_8 = arith.constant 0 : index
    %18 = vector.load %arg5[%c0_7, %c0_8] : memref<128x2xf32, #tpu.memory_space<vmem>>, vector<128x2xf32>
    %cst_9 = arith.constant dense<0.000000e+00> : vector<8x2xf32>
    %19 = tpu.matmul %17, %18, %cst_9 {dimension_numbers = #tpu.dot_dimension_numbers<[1], [0], [0], [1], [0, 0, 1, 1], [], []>} : vector<8x128xf32>, vector<128x2xf32>, vector<8x2xf32> -> vector<8x2xf32>
    %20 = vector.extract_strided_slice %19 {offsets = [0, 0], sizes = [8, 1], strides = [1, 1]} : vector<8x2xf32> to vector<8x1xf32>
    %21 = vector.extract_strided_slice %19 {offsets = [0, 1], sizes = [8, 1], strides = [1, 1]} : vector<8x2xf32> to vector<8x1xf32>
    %c0_10 = arith.constant 0 : index
    %c0_11 = arith.constant 0 : index
    %22 = vector.load %arg6[%c0_10, %c0_11] : memref<3x128xf32, #tpu.memory_space<vmem>>, vector<3x128xf32>
    %23 = vector.extract_strided_slice %22 {offsets = [0, 0], sizes = [1, 128], strides = [1, 1]} : vector<3x128xf32> to vector<1x128xf32>
    %24 = vector.broadcast %23 : vector<1x128xf32> to vector<8x128xf32>
    %25 = vector.broadcast %20 : vector<8x1xf32> to vector<8x128xf32>
    %26 = arith.mulf %24, %25 : vector<8x128xf32>
    %27 = vector.extract_strided_slice %22 {offsets = [1, 0], sizes = [1, 128], strides = [1, 1]} : vector<3x128xf32> to vector<1x128xf32>
    %28 = vector.broadcast %27 : vector<1x128xf32> to vector<8x128xf32>
    %29 = vector.broadcast %21 : vector<8x1xf32> to vector<8x128xf32>
    %30 = arith.mulf %28, %29 : vector<8x128xf32>
    %31 = arith.addf %26, %30 : vector<8x128xf32>
    %32 = vector.extract_strided_slice %22 {offsets = [2, 0], sizes = [1, 128], strides = [1, 1]} : vector<3x128xf32> to vector<1x128xf32>
    %33 = vector.broadcast %32 : vector<1x128xf32> to vector<8x128xf32>
    %34 = arith.mulf %31, %33 : vector<8x128xf32>
    %c0_12 = arith.constant 0 : index
    %c0_13 = arith.constant 0 : index
    %35 = vector.load %arg7[%c0_12, %c0_13] : memref<8x128xf32, #tpu.memory_space<vmem>>, vector<8x128xf32>
    tpu.vector_store %arg7[%c0_12, %c0_13], %34 {strides = array<i32>} : memref<8x128xf32, #tpu.memory_space<vmem>>, vector<8x128xf32>,
    return
  }
  func.func @transform_0(%arg0: i32) -> (i32, i32) {
    %c0_i32 = arith.constant 0 : i32
    %c0_i32_0 = arith.constant 0 : i32
    return %arg0, %c0_i32 : i32, i32
  }
  func.func @transform_1(%arg0: i32) -> (i32, i32) {
    %c0_i32 = arith.constant 0 : i32
    %c0_i32_0 = arith.constant 0 : i32
    %c0_i32_1 = arith.constant 0 : i32
    return %c0_i32, %c0_i32_0 : i32, i32
  }
  func.func @transform_2(%arg0: i32) -> (i32, i32) {
    %c0_i32 = arith.constant 0 : i32
    %c0_i32_0 = arith.constant 0 : i32
    %c0_i32_1 = arith.constant 0 : i32
    return %c0_i32, %c0_i32_0 : i32, i32
  }
  func.func @transform_3(%arg0: i32) -> (i32, i32) {
    %c0_i32 = arith.constant 0 : i32
    %c0_i32_0 = arith.constant 0 : i32
    %c0_i32_1 = arith.constant 0 : i32
    return %c0_i32, %c0_i32_0 : i32, i32
  }
  func.func @transform_4(%arg0: i32) -> (i32, i32) {
    %c0_i32 = arith.constant 0 : i32
    %c0_i32_0 = arith.constant 0 : i32
    %c0_i32_1 = arith.constant 0 : i32
    return %c0_i32, %c0_i32_0 : i32, i32
  }
  func.func @transform_5(%arg0: i32) -> (i32, i32) {
    %c0_i32 = arith.constant 0 : i32
    %c0_i32_0 = arith.constant 0 : i32
    %c0_i32_1 = arith.constant 0 : i32
    return %c0_i32, %c0_i32_0 : i32, i32
  }
  func.func @transform_6(%arg0: i32) -> (i32, i32) {
    %c0_i32 = arith.constant 0 : i32
    %c0_i32_0 = arith.constant 0 : i32
    return %arg0, %c0_i32 : i32, i32
  }
}

</mosaic_0001>

<llo_original>
// kernel: _ode_forward.1
$region0: #{_ode_forward.1}
  #allocation0 [shape = 'u32[]', space=smem, size = 0x4, offset = 0x4, fixed_abs, tag = 'smem constant byte address 0x4 - core index']
  #allocation1 [shape = 'u32[144,128]{1,0:T(1,128)}', space=vmem, size = 0x12000, scoped, tag = 'internal scratch']
  %s0 = inlined_call_operand.vmem [shape: f32[8,8], index: 0, kind: input, shape index: {}]
  %s1 = inlined_call_operand.vmem [shape: f32[3,8], index: 1, kind: input, shape index: {}]
  %s2 = inlined_call_operand.vmem [shape: f32[8,128], index: 2, kind: input, shape index: {}]
  %s3 = inlined_call_operand.vmem [shape: f32[1,128], index: 3, kind: input, shape index: {}]
  %s4 = inlined_call_operand.vmem [shape: f32[128,2], index: 4, kind: input, shape index: {}]
  %s5 = inlined_call_operand.vmem [shape: f32[3,128], index: 5, kind: input, shape index: {}]
  %s6 = inlined_call_operand.hbm [shape: f32[8,128], index: 6, kind: output, shape index: {}]
  %s7 = sld [smem:[#allocation0]]
  $region34: #{_ode_forward.1} parent=0
    _
  %s9 = ssub.s32 1, %s7
  %s10 = scalar_select 0, %s9, %s7
  $region1: #{_ode_forward.1} parent=0
    #allocation2 [shape = 'u8[4096]{0}', space=vmem, size = 0x1000, scoped, tag = 'output window, operand 0, single buffered']
    #allocation3 [shape = 's32[1]{0}', space=sflag, size = 0x4, scoped, tag = 'scoped memory for _ode_forward.1']
    %11 = vsyncpa [#allocation3], 0
    // Predicated region
    $region2: #{_ode_forward.1} parent=1 // pred_check
      _
    $region3: #{_ode_forward.1} parent=1 // pred_check_branch
      %13 = sbr.rel (0) target = $region5
    $region4: #{_ode_forward.1} parent=1 // pred_region
      _
    $region5: #{_ode_forward.1} parent=1 // pred_fallthru
      _
    // Predicated region
    $region6: #{_ode_forward.1} parent=1 // pred_check
      _
    $region7: #{_ode_forward.1} parent=1 // pred_check_branch
      %15 = sbr.rel (0) target = $region9
    $region8: #{_ode_forward.1} parent=1 // pred_region
      _
    $region9: #{_ode_forward.1} parent=1 // pred_fallthru
      _
    // Predicated region
    $region10: #{_ode_forward.1} parent=1 // pred_check
      _
    $region11: #{_ode_forward.1} parent=1 // pred_check_branch
      %17 = sbr.rel (0) target = $region13
    $region12: #{_ode_forward.1} parent=1 // pred_region
      _
    $region13: #{_ode_forward.1} parent=1 // pred_fallthru
      _
    // Predicated region
    $region14: #{_ode_forward.1} parent=1 // pred_check
      _
    $region15: #{_ode_forward.1} parent=1 // pred_check_branch
      %19 = sbr.rel (0) target = $region17
    $region16: #{_ode_forward.1} parent=1 // pred_region
      _
    $region17: #{_ode_forward.1} parent=1 // pred_fallthru
      _
    // Predicated region
    $region18: #{_ode_forward.1} parent=1 // pred_check
      _
    $region19: #{_ode_forward.1} parent=1 // pred_check_branch
      %21 = sbr.rel (0) target = $region21
    $region20: #{_ode_forward.1} parent=1 // pred_region
      _
    $region21: #{_ode_forward.1} parent=1 // pred_fallthru
      _
    // Predicated region
    $region22: #{_ode_forward.1} parent=1 // pred_check
      _
    $region23: #{_ode_forward.1} parent=1 // pred_check_branch
      %23 = sbr.rel (0) target = $region25
    $region24: #{_ode_forward.1} parent=1 // pred_region
      _
    $region25: #{_ode_forward.1} parent=1 // pred_fallthru
      _
    %v24 = vld [vmem:[%s1] sm:$0x7]
    %v25 = vld [vmem:[%s0] sm:$0xff]
    %v26 = vlaneseq
    %v27 = vshrl.u32 %v26, 7
    %v28 = vsub.s32 0, %v27
    %v29 = vrot.slane %v24, %v28
    %v30 = vmul.f32 %v25, %v29
    %v31 = vlaneseq
    %v32 = vshrl.u32 %v31, 7
    %v33 = vsub.s32 1, %v32
    %v34 = vrot.slane %v24, %v33
    %v35 = vmul.f32 %v30, %v34
    %v36 = vlaneseq
    %v37 = vshrl.u32 %v36, 7
    %v38 = vsub.s32 2, %v37
    %v39 = vrot.slane %v24, %v38
    %v40 = vadd.f32 %v35, %v39
    %v41 = vmul.f32 %v30, %v40
    %v42 = vld [vmem:[%s2] sm:$0xff]
    %v43 = vld [vmem:[%s3] sm:$0x1]
    %v45 = vlaneseq
    %v46 = vshrl.u32 %v45, 7
    %v47 = vsub.s32 0, %v46
    %v48 = vrot.slane %v43, %v47
    %vm50 = vcmask 64512
    %v52 = vsel %vm50, %v41, 0
    %54 = vmatprep.subr.mxu0 0.0
    %55 = vmatpush1.msra.mxu0 %v42
    %56 = vmatprep.subr.mxu0 0.0
    %57 = vmatpush1.msra.mxu0 0.0
    %58 = vmatprep.subr.mxu0 0.0
    %59 = vmatpush1.msra.mxu0 0.0
    %60 = vmatprep.subr.mxu0 0.0
    %61 = vmatpush1.msra.mxu0 0.0
    %62 = vmatprep.subr.mxu0 0.0
    %63 = vmatpush1.msra.mxu0 0.0
    %64 = vmatprep.subr.mxu0 0.0
    %65 = vmatpush1.msra.mxu0 0.0
    %66 = vmatprep.subr.mxu0 0.0
    %67 = vmatpush1.msra.mxu0 0.0
    %68 = vmatprep.subr.mxu0 0.0
    %69 = vmatpush1.msra.mxu0 0.0
    %70 = vmatprep.subr.mxu0 0.0
    %71 = vmatpush1.msra.mxu0 0.0
    %72 = vmatprep.subr.mxu0 0.0
    %73 = vmatpush1.msra.mxu0 0.0
    %74 = vmatprep.subr.mxu0 0.0
    %75 = vmatpush1.msra.mxu0 0.0
    %76 = vmatprep.subr.mxu0 0.0
    %77 = vmatpush1.msra.mxu0 0.0
    %78 = vmatprep.subr.mxu0 0.0
    %79 = vmatpush1.msra.mxu0 0.0
    %80 = vmatprep.subr.mxu0 0.0
    %81 = vmatpush1.msra.mxu0 0.0
    %82 = vmatprep.subr.mxu0 0.0
    %83 = vmatpush1.msra.mxu0 0.0
    %84 = vmatprep.subr.mxu0 0.0
    %85 = vmatpush1.msra.mxu0 0.0
    %86 = vmatprep.subr.mxu0 0.0
    %87 = vmatpush1.msra.mxu0 0.0
    %88 = vmatprep.subr.mxu0 0.0
    %89 = vmatpush1.msra.mxu0 0.0
    %90 = vmatprep.subr.mxu0 0.0
    %91 = vmatpush1.msra.mxu0 0.0
    %92 = vmatprep.subr.mxu0 0.0
    %93 = vmatpush1.msra.mxu0 0.0
    %94 = vmatprep.subr.mxu0 0.0
    %95 = vmatpush1.msra.mxu0 0.0
    %96 = vmatprep.subr.mxu0 0.0
    %97 = vmatpush1.msra.mxu0 0.0
    %98 = vmatprep.subr.mxu0 0.0
    %99 = vmatpush1.msra.mxu0 0.0
    %100 = vmatprep.subr.mxu0 0.0
    %101 = vmatpush1.msra.mxu0 0.0
    %102 = vmatprep.subr.mxu0 0.0
    %103 = vmatpush1.msra.mxu0 0.0
    %104 = vmatprep.subr.mxu0 0.0
    %105 = vmatpush1.msra.mxu0 0.0
    %106 = vmatprep.subr.mxu0 0.0
    %107 = vmatpush1.msra.mxu0 0.0
    %108 = vmatprep.subr.mxu0 0.0
    %109 = vmatpush1.msra.mxu0 0.0
    %110 = vmatprep.subr.mxu0 0.0
    %111 = vmatpush1.msra.mxu0 0.0
    %112 = vmatprep.subr.mxu0 0.0
    %113 = vmatpush1.msra.mxu0 0.0
    %114 = vmatprep.subr.mxu0 0.0
    %115 = vmatpush1.msra.mxu0 0.0
    %116 = vmatprep.subr.mxu0 0.0
    %117 = vmatpush1.msra.mxu0 0.0
    %118 = vmatprep.mubr.f32.mxu0 0.0
    %119 = vmatmul.mubr.f32.gmra.mrb[0].mxu0 %v52
    %v120 = vpop.f32.mrb[0].mxu0
    %v121 = vadd.f32 %v48, %v120
    %v122 = vpop.f32.mrb[0].mxu0
    %123 = vdwg.mxu0
    %v124 = vmul.f32 %v121, 1.442695
    %v125 = vpow.pop %v124
    %v126 = vld [vmem:[%s4] sm:$0xff]
    %v127 = vld [vmem:[%s4 + $0x8] sm:$0xff]
    %v128 = vld [vmem:[%s4 + $0x10] sm:$0xff]
    %v129 = vld [vmem:[%s4 + $0x18] sm:$0xff]
    %v130 = vld [vmem:[%s4 + $0x20] sm:$0xff]
    %v131 = vld [vmem:[%s4 + $0x28] sm:$0xff]
    %v132 = vld [vmem:[%s4 + $0x30] sm:$0xff]
    %v133 = vld [vmem:[%s4 + $0x38] sm:$0xff]
    %v134 = vld [vmem:[%s4 + $0x40] sm:$0xff]
    %v135 = vld [vmem:[%s4 + $0x48] sm:$0xff]
    %v136 = vld [vmem:[%s4 + $0x50] sm:$0xff]
    %v137 = vld [vmem:[%s4 + $0x58] sm:$0xff]
    %v138 = vld [vmem:[%s4 + $0x60] sm:$0xff]
    %v139 = vld [vmem:[%s4 + $0x68] sm:$0xff]
    %v140 = vld [vmem:[%s4 + $0x70] sm:$0xff]
    %v141 = vld [vmem:[%s4 + $0x78] sm:$0xff]
    %142 = vmatprep.subr.mxu0 0.0
    %143 = vmatpush1.msra.mxu0 %v126
    %144 = vmatprep.subr.mxu0 0.0
    %145 = vmatpush1.msra.mxu0 %v127
    %146 = vmatprep.subr.mxu0 0.0
    %147 = vmatpush1.msra.mxu0 %v128
    %148 = vmatprep.subr.mxu0 0.0
    %149 = vmatpush1.msra.mxu0 %v129
    %150 = vmatprep.subr.mxu0 0.0
    %151 = vmatpush1.msra.mxu0 %v130
    %152 = vmatprep.subr.mxu0 0.0
    %153 = vmatpush1.msra.mxu0 %v131
    %154 = vmatprep.subr.mxu0 0.0
    %155 = vmatpush1.msra.mxu0 %v132
    %156 = vmatprep.subr.mxu0 0.0
    %157 = vmatpush1.msra.mxu0 %v133
    %158 = vmatprep.subr.mxu0 0.0
    %159 = vmatpush1.msra.mxu0 %v134
    %160 = vmatprep.subr.mxu0 0.0
    %161 = vmatpush1.msra.mxu0 %v135
    %162 = vmatprep.subr.mxu0 0.0
    %163 = vmatpush1.msra.mxu0 %v136
    %164 = vmatprep.subr.mxu0 0.0
    %165 = vmatpush1.msra.mxu0 %v137
    %166 = vmatprep.subr.mxu0 0.0
    %167 = vmatpush1.msra.mxu0 %v138
    %168 = vmatprep.subr.mxu0 0.0
    %169 = vmatpush1.msra.mxu0 %v139
    %170 = vmatprep.subr.mxu0 0.0
    %171 = vmatpush1.msra.mxu0 %v140
    %172 = vmatprep.subr.mxu0 0.0
    %173 = vmatpush1.msra.mxu0 %v141
    %174 = vmatprep.subr.mxu0 0.0
    %175 = vmatpush1.msra.mxu0 0.0
    %176 = vmatprep.subr.mxu0 0.0
    %177 = vmatpush1.msra.mxu0 0.0
    %178 = vmatprep.subr.mxu0 0.0
    %179 = vmatpush1.msra.mxu0 0.0
    %180 = vmatprep.subr.mxu0 0.0
    %181 = vmatpush1.msra.mxu0 0.0
    %182 = vmatprep.subr.mxu0 0.0
    %183 = vmatpush1.msra.mxu0 0.0
    %184 = vmatprep.subr.mxu0 0.0
    %185 = vmatpush1.msra.mxu0 0.0
    %186 = vmatprep.subr.mxu0 0.0
    %187 = vmatpush1.msra.mxu0 0.0
    %188 = vmatprep.subr.mxu0 0.0
    %189 = vmatpush1.msra.mxu0 0.0
    %190 = vmatprep.subr.mxu0 0.0
    %191 = vmatpush1.msra.mxu0 0.0
    %192 = vmatprep.subr.mxu0 0.0
    %193 = vmatpush1.msra.mxu0 0.0
    %194 = vmatprep.subr.mxu0 0.0
    %195 = vmatpush1.msra.mxu0 0.0
    %196 = vmatprep.subr.mxu0 0.0
    %197 = vmatpush1.msra.mxu0 0.0
    %198 = vmatprep.subr.mxu0 0.0
    %199 = vmatpush1.msra.mxu0 0.0
    %200 = vmatprep.subr.mxu0 0.0
    %201 = vmatpush1.msra.mxu0 0.0
    %202 = vmatprep.subr.mxu0 0.0
    %203 = vmatpush1.msra.mxu0 0.0
    %204 = vmatprep.subr.mxu0 0.0
    %205 = vmatpush1.msra.mxu0 0.0
    %206 = vmatprep.mubr.f32.mxu0 0.0
    %207 = vmatmul.mubr.f32.gmra.mrb[0].mxu0 %v125
    %v208 = vpop.f32.mrb[0].mxu0
    %v209 = vadd.f32 0.0, %v208
    %v210 = vpop.f32.mrb[0].mxu0
    %211 = vdwg.mxu0
    %v212 = vld [vmem:[%s5] sm:$0x7]
    %v213 = vlaneseq
    %v214 = vshrl.u32 %v213, 7
    %v215 = vsub.s32 0, %v214
    %v216 = vrot.slane %v212, %v215
    %218 = vset.pattern.permute.xlu0 0
    %219 = vperm.xlu0 %218, %v209
    %v220 = vpop.permute.xlu0 %219
    %v222 = vmul.f32 %v216, %v220
    %v223 = vlaneseq
    %v224 = vshrl.u32 %v223, 7
    %v225 = vsub.s32 1, %v224
    %v226 = vrot.slane %v212, %v225
    %227 = vset.pattern.permute.xlu0 1
    %228 = vperm.xlu0 %227, %v209
    %v229 = vpop.permute.xlu0 %228
    %v231 = vmul.f32 %v226, %v229
    %v232 = vadd.f32 %v222, %v231
    %v233 = vlaneseq
    %v234 = vshrl.u32 %v233, 7
    %v235 = vsub.s32 2, %v234
    %v236 = vrot.slane %v212, %v235
    %v237 = vmul.f32 %v232, %v236
    %238 = vst [vmem:[#allocation2] sm:$0xff] %v237
    // Predicated region
    $region26: #{_ode_forward.1} parent=1 // pred_check
      _
    $region27: #{_ode_forward.1} parent=1 // pred_check_branch
      %240 = sbr.rel (0) target = $region29
    $region28: #{_ode_forward.1} parent=1 // pred_region
      %s242 = ssub.s32 128, 128
      %243 = vsyncadd [#allocation3], %s242
      %s245 = sshll.u32 [#allocation2], 4
      %s246 = int_to_ptr.vmem [resolvable:$true] %s245
      %248 = dma.vmem_to_hbm [thread:$0]  %s246, 128, %s6, [#allocation3]
    $region29: #{_ode_forward.1} parent=1 // pred_fallthru
      _
    // Predicated region
    $region30: #{_ode_forward.1} parent=1 // pred_check
      _
    $region31: #{_ode_forward.1} parent=1 // pred_check_branch
      %250 = sbr.rel (0) target = $region33
    $region32: #{_ode_forward.1} parent=1 // pred_region
      %251 = dma.done [#allocation3], 128
    $region33: #{_ode_forward.1} parent=1 // pred_fallthru
      _
    %252 = vsyncpa [#allocation3], 1

</llo_original>
